<compile_context>
chip_gen: v6e
topology: v6e:2x2x1
jax: 0.10.0
libtpu: 0.0.40
codegen_flags: <defaults>
</compile_context>

<pallas_src>
import functools

import jax
import jax.numpy as jnp
from jax import lax
from jax.experimental import pallas as pl
from jax.experimental.pallas import tpu as pltpu


# ---------------------------------------------------------------------------
# chunking helper: rows per grid step (multiple of 8 unless it covers the
# whole batch), sized so the double-buffered block stays ~<= `budget` bytes
# (conservative enough for v7x's 64 MiB VMEM / 32 MiB default scoped limit).
# ---------------------------------------------------------------------------
def _row_chunk(batch, row_bytes, cap=256, budget=8 << 20):
    if batch <= 8:
        return batch
    tb = min(cap, max(8, budget // (2 * row_bytes)))
    if tb >= batch:
        return batch
    return max(8, (tb // 8) * 8)


# ---------------------------------------------------------------------------
# Kernel 1: per-row last-token index from input_ids (vectorized, chunked)
#   first_pad = min_t ( t if ids[b,t]==pad else T )
#   seq_len   = T-1 if first_pad == 0 else first_pad - 1
# (== torch's "(argmax(eq) - 1) % T" in every case)
# ---------------------------------------------------------------------------
def _seq_lengths_kernel(pad_token_id, ids_ref, out_ref):
    tb, t = ids_ref.shape
    ids = ids_ref[...]
    t_idx = lax.broadcasted_iota(jnp.int32, (tb, t), 1)
    cand = jnp.where(ids == pad_token_id, t_idx, t)
    first_pad = jnp.min(cand, axis=1, keepdims=True)          # (tb, 1)
    out_ref[...] = jnp.where(first_pad == 0, t - 1, first_pad - 1)


def _compute_sequence_lengths(input_ids, pad_token_id):
    B, T = input_ids.shape
    ids32 = input_ids.astype(jnp.int32)
    tb = _row_chunk(B, T * 4)
    seq2d = pl.pallas_call(
        functools.partial(_seq_lengths_kernel, int(pad_token_id)),
        out_shape=jax.ShapeDtypeStruct((B, 1), jnp.int32),
        grid=(pl.cdiv(B, tb),),
        in_specs=[pl.BlockSpec((tb, T), lambda i: (i, 0))],
        out_specs=pl.BlockSpec((tb, 1), lambda i: (i, 0)),
        compiler_params=pltpu.CompilerParams(
            dimension_semantics=("parallel",)),
    )(ids32)
    return seq2d.reshape(B)


# ---------------------------------------------------------------------------
# Kernel 2: gather hidden_states[b, seq_len[b], :] -> out[b, :]
#   one row-DMA per batch row, straight HBM -> output VMEM block,
#   single shared DMA semaphore + one aggregate wait per chunk.
# ---------------------------------------------------------------------------
def _gather_kernel(T, B, seq_ref, hs_ref, out_ref, sem):
    # seq_ref : SMEM (B,)  int32  -- scalar-prefetched last-token indices
    # hs_ref  : HBM  (B*T, H)     -- hidden_states, never staged wholesale
    # out_ref : VMEM (TB, H)      -- this chunk of the pooled output
    # sem     : single DMA semaphore shared by all row copies of the chunk
    TB, H = out_ref.shape
    base = pl.program_id(0) * TB

    def _issue(b):
        gb = jnp.minimum(base + b, B - 1)      # clamp padded rows of last chunk
        row = gb * T + seq_ref[gb]
        pltpu.make_async_copy(
            hs_ref.at[pl.ds(row, 1)], out_ref.at[pl.ds(b, 1)], sem
        ).start()

    # Issue every row DMA before any wait so all copies are in flight together.
    if TB <= 32:
        for b in range(TB):                    # static unroll (LLO visibility)
            _issue(b)
    else:
        @pl.loop(0, TB)
        def _(b):
            _issue(b)

    # One aggregate wait for all TB row copies (TB * H * itemsize bytes).
    pltpu.make_async_copy(hs_ref.at[pl.ds(0, TB)], out_ref, sem).wait()


def _gather_last_tokens(hidden_states, seq_lengths):
    B, T, H = hidden_states.shape
    hs_flat = hidden_states.reshape(B * T, H)  # row b*T + t == hidden_states[b, t]
    itemsize = jnp.dtype(hidden_states.dtype).itemsize
    tb = _row_chunk(B, H * itemsize)
    kernel = functools.partial(_gather_kernel, T, B)
    return pl.pallas_call(
        kernel,
        out_shape=jax.ShapeDtypeStruct((B, H), hidden_states.dtype),
        grid_spec=pltpu.PrefetchScalarGridSpec(
            num_scalar_prefetch=1,
            grid=(pl.cdiv(B, tb),),
            in_specs=[pl.BlockSpec(memory_space=pl.ANY)],      # hidden_states (HBM)
            out_specs=pl.BlockSpec((tb, H), lambda i, seq: (i, 0)),
            scratch_shapes=[pltpu.SemaphoreType.DMA],          # ONE shared semaphore
        ),
        compiler_params=pltpu.CompilerParams(
            dimension_semantics=("parallel",)),
    )(seq_lengths.astype(jnp.int32), hs_flat)


# ---------------------------------------------------------------------------
# Module-equivalent wrapper
# ---------------------------------------------------------------------------
def last_token_pooling(input_ids, hidden_states, pad_token_id):
    """input_ids: [B, T] int, hidden_states: [B, T, H]. Returns [B, H]."""
    B, T = input_ids.shape
    if pad_token_id is None:
        # Static config branch, handled host-side like the PyTorch module.
        if B != 1:
            raise ValueError(
                "Cannot handle batch sizes > 1 if no padding token is defined.")
        seq_lengths = jnp.full((B,), T - 1, dtype=jnp.int32)
    else:
        seq_lengths = _compute_sequence_lengths(input_ids, pad_token_id)
    return _gather_last_tokens(hidden_states, seq_lengths)


# ---------------------------------------------------------------------------
# Pure-JAX reference (mirrors the torch code verbatim)
# ---------------------------------------------------------------------------
def last_token_pooling_ref(input_ids, hidden_states, pad_token_id):
    B, T = input_ids.shape
    if pad_token_id is None:
        seq = jnp.full((B,), T - 1, dtype=jnp.int32)
    else:
        first = jnp.argmax((input_ids == pad_token_id).astype(jnp.int32), axis=-1)
        seq = (first - 1) % T
    return hidden_states[jnp.arange(B), seq]


if __name__ == "__main__":
    B, T, H = 3, 8, 128
    pad_token_id = 0

    key = jax.random.PRNGKey(0)
    k_ids, k_hs = jax.random.split(key)

    # Token ids in [1, 100). Row 0: padded tail; row 1: no pad (wraps to T-1);
    # row 2: all pad (pad at t=0, wraps to T-1).
    ids = jax.random.randint(k_ids, (B, T), 1, 100, dtype=jnp.int32)
    lengths = jnp.array([5, T, 0], dtype=jnp.int32)
    t_idx = jnp.arange(T, dtype=jnp.int32)[None, :]
    input_ids = jnp.where(t_idx < lengths[:, None], ids, pad_token_id)

    hidden_states = jax.random.normal(k_hs, (B, T, H), dtype=jnp.float32)

    out = last_token_pooling(input_ids, hidden_states, pad_token_id)
    out = jax.block_until_ready(out)
    ref = last_token_pooling_ref(input_ids, hidden_states, pad_token_id)
    assert out.shape == (B, H)
    assert jnp.array_equal(out, ref), "mismatch vs reference (pad branch)"

    # pad_token_id is None branch (batch must be 1).
    out1 = last_token_pooling(input_ids[:1], hidden_states[:1], None)
    out1 = jax.block_until_ready(out1)
    ref1 = last_token_pooling_ref(input_ids[:1], hidden_states[:1], None)
    assert jnp.array_equal(out1, ref1), "mismatch vs reference (no-pad branch)"

    print("KERNEL_OK")
</pallas_src>

<mosaic_0001>
module attributes {stable_mosaic.version = 11 : i64} {
  func.func @_seq_lengths_kernel(%arg0: i32, %arg1: memref<3x8xi32, #tpu.memory_space<vmem>>, %arg2: memref<3x1xi32, #tpu.memory_space<vmem>>) attributes {dimension_semantics = [#tpu.dimension_semantics<parallel>], iteration_bounds = array<i64: 1>, scalar_prefetch = 0 : i64, scratch_operands = 0 : i64, tpu.core_type = #tpu.core_type<tc>, window_params = [{transform_indices = @transform_0, window_bounds = array<i64: 3, 8>}, {transform_indices = @transform_1, window_bounds = array<i64: 3, 1>}]} {
    %c0 = arith.constant 0 : index
    %c0_0 = arith.constant 0 : index
    %0 = vector.load %arg1[%c0, %c0_0] : memref<3x8xi32, #tpu.memory_space<vmem>>, vector<3x8xi32>
    %1 = tpu.iota {dimensions = array<i32: 1>} : vector<3x8xi32>
    %c0_i32 = arith.constant 0 : i32
    %2 = vector.broadcast %c0_i32 : i32 to vector<3x8xi32>
    %3 = arith.cmpi eq, %0, %2 : vector<3x8xi32>
    %c8_i32 = arith.constant 8 : i32
    %4 = vector.broadcast %c8_i32 : i32 to vector<3x8xi32>
    %5 = arith.select %3, %1, %4 : vector<3x8xi1>, vector<3x8xi32>
    %cst = arith.constant dense<2147483647> : vector<3xi32>
    %6 = vector.multi_reduction <minsi>, %5, %cst [1] : vector<3x8xi32> to vector<3xi32>
    %7 = vector.shape_cast %6 : vector<3xi32> to vector<3x1xi32>
    %c0_i32_1 = arith.constant 0 : i32
    %8 = vector.broadcast %c0_i32_1 : i32 to vector<3x1xi32>
    %9 = arith.cmpi eq, %7, %8 : vector<3x1xi32>
    %c1_i32 = arith.constant 1 : i32
    %10 = vector.broadcast %c1_i32 : i32 to vector<3x1xi32>
    %11 = arith.subi %7, %10 : vector<3x1xi32>
    %c7_i32 = arith.constant 7 : i32
    %12 = vector.broadcast %c7_i32 : i32 to vector<3x1xi32>
    %13 = arith.select %9, %12, %11 : vector<3x1xi1>, vector<3x1xi32>
    %c0_2 = arith.constant 0 : index
    %c0_3 = arith.constant 0 : index
    %14 = vector.load %arg2[%c0_2, %c0_3] : memref<3x1xi32, #tpu.memory_space<vmem>>, vector<3x1xi32>
    tpu.vector_store %arg2[%c0_2, %c0_3], %13 {strides = array<i32>} : memref<3x1xi32, #tpu.memory_space<vmem>>, vector<3x1xi32>,
    return
  }
  func.func @transform_0(%arg0: i32) -> (i32, i32) {
    %c0_i32 = arith.constant 0 : i32
    %c0_i32_0 = arith.constant 0 : i32
    return %arg0, %c0_i32 : i32, i32
  }
  func.func @transform_1(%arg0: i32) -> (i32, i32) {
    %c0_i32 = arith.constant 0 : i32
    %c0_i32_0 = arith.constant 0 : i32
    return %arg0, %c0_i32 : i32, i32
  }
}

</mosaic_0001>

<llo_original>
// kernel: tpu_custom_call.1
$region0: #{tpu_custom_call.1}
  #allocation0 [shape = 'u32[]', space=smem, size = 0x4, offset = 0x4, fixed_abs, tag = 'smem constant byte address 0x4 - core index']
  #allocation1 [shape = 'u32[144,128]{1,0:T(1,128)}', space=vmem, size = 0x12000, scoped, tag = 'internal scratch']
  %s0 = inlined_call_operand.hbm [shape: s32[3,8], index: 0, kind: input, shape index: {}]
  %s1 = inlined_call_operand.vmem [shape: s32[3,1], index: 1, kind: output, shape index: {}]
  %s2 = sld [smem:[#allocation0]]
  $region18: #{tpu_custom_call.1} parent=0
    _
  %s4 = ssub.s32 1, %s2
  %s5 = scalar_select 0, %s4, %s2
  $region1: #{tpu_custom_call.1} parent=0
    #allocation2 [shape = 'u8[2048]{0}', space=vmem, size = 0x800, scoped, tag = 'input window, operand 0, single buffered']
    #allocation3 [shape = 's32[1]{0}', space=sflag, size = 0x4, scoped, tag = 'scoped memory for tpu_custom_call.1']
    %6 = vsyncpa [#allocation3], 0
    // Predicated region
    $region2: #{tpu_custom_call.1} parent=1 // pred_check
      _
    $region3: #{tpu_custom_call.1} parent=1 // pred_check_branch
      %8 = sbr.rel (0) target = $region5
    $region4: #{tpu_custom_call.1} parent=1 // pred_region
      %s10 = ssub.s32 64, 64
      %11 = vsyncadd [#allocation3], %s10
      %s13 = sshll.u32 [#allocation2], 4
      %s14 = int_to_ptr.vmem [resolvable:$true] %s13
      %16 = dma.hbm_to_vmem [thread:$0]  %s0, 64, %s14, [#allocation3]
    $region5: #{tpu_custom_call.1} parent=1 // pred_fallthru
      _
    // Predicated region
    $region6: #{tpu_custom_call.1} parent=1 // pred_check
      _
    $region7: #{tpu_custom_call.1} parent=1 // pred_check_branch
      %18 = sbr.rel (0) target = $region9
    $region8: #{tpu_custom_call.1} parent=1 // pred_region
      %19 = dma.done [#allocation3], 64
    $region9: #{tpu_custom_call.1} parent=1 // pred_fallthru
      _
    %v20 = vld [vmem:[#allocation2] sm:$0x7]
    %v21 = vlaneseq
    %v22 = vand.u32 %v21, 127
    %vm23 = vcmp.eq.s32.totalorder %v20, 0
    %v24 = vsel %vm23, %v22, 8
    %vm25 = vcmask 59392
    %v26 = vsel %vm25, %v24, 2147483647
    %v27 = vand.u32 %v26, 65535
    %v28 = vshra.s32 %v26, 16
    %v29 = vcvt.s32.f32 %v27
    %v30 = vcvt.s32.f32 %v28
    %31 = vmin.xlane.f32.xlu0 %v30
    %v32 = vpop.xlane.xlu0 %31
    %vm33 = vcmp.eq.f32.partialorder %v30, %v32
    %v34 = vsel %vm33, %v29, inf
    %35 = vmin.xlane.f32.xlu0 %v34
    %v36 = vpop.xlane.xlu0 %35
    %v37 = vcvt.f32.s32 %v36
    %v38 = vcvt.f32.s32 %v32
    %v39 = vshll.u32 %v38, 16
    %v40 = vadd.s32 %v39, %v37
    %vm41 = vcmp.eq.s32.totalorder %v40, 0
    %v42 = vsub.s32 %v40, 1
    %v43 = vsel %vm41, 7, %v42
    %vm44 = vcmask 2048
    %45 = vst.msk [vmem:[%s1] sm:$0x7] %vm44, %v43
    // Predicated region
    $region10: #{tpu_custom_call.1} parent=1 // pred_check
      _
    $region11: #{tpu_custom_call.1} parent=1 // pred_check_branch
      %47 = sbr.rel (0) target = $region13
    $region12: #{tpu_custom_call.1} parent=1 // pred_region
      _
    $region13: #{tpu_custom_call.1} parent=1 // pred_fallthru
      _
    // Predicated region
    $region14: #{tpu_custom_call.1} parent=1 // pred_check
      _
    $region15: #{tpu_custom_call.1} parent=1 // pred_check_branch
      %49 = sbr.rel (0) target = $region17
    $region16: #{tpu_custom_call.1} parent=1 // pred_region
      _
    $region17: #{tpu_custom_call.1} parent=1 // pred_fallthru
      _
    %50 = vsyncpa [#allocation3], 1

</llo_original>
